<compile_context>
chip_gen: v5e
topology: v5e:2x2
jax: 0.10.0
libtpu: 0.0.40
codegen_flags: <defaults>
</compile_context>

<pallas_src>
import math

import jax
import jax.numpy as jnp
from jax.experimental import pallas as pl
from jax.experimental.pallas import tpu as pltpu


def build_pe_table(embed_dim: int = 512, max_len: int = 5000) -> jnp.ndarray:
    """Deterministic sinusoidal table, identical formula to the nn.Module."""
    position = jnp.arange(0, max_len, dtype=jnp.float32)[:, None]          # (max_len, 1)
    divisor = jnp.exp(
        jnp.arange(0, embed_dim, 2, dtype=jnp.float32)
        * (-math.log(10000.0) / embed_dim)
    )                                                                       # (embed_dim/2,)
    pe = jnp.zeros((max_len, embed_dim), dtype=jnp.float32)
    pe = pe.at[:, 0::2].set(jnp.sin(position * divisor))
    pe = pe.at[:, 1::2].set(jnp.cos(position * divisor))
    return pe                                                               # (max_len, embed_dim)


def _pe_add_kernel(x_ref, pe_ref, o_ref):
    # x_ref:  (TS, B*D) tile of seq rows
    # pe_ref: (1,  B*D) positional-encoding row (constant index_map -> VMEM-resident)
    # Elementwise VPU add, broadcasting pe over the sublane (seq-row) axis.
    o_ref[...] = x_ref[...] + pe_ref[...]


def _pick_row_tile(seq_len: int, row_bytes: int,
                   target_bytes: int = 4 * 1024 * 1024) -> int:
    """Pick a seq-row tile ~target_bytes; multiple of 8 (sublanes) or full extent."""
    ts = max(1, target_bytes // max(1, row_bytes))
    if ts >= seq_len:
        return seq_len                       # full extent -> always a legal block dim
    ts = max(8, (ts // 8) * 8)               # sublane-aligned
    return min(ts, seq_len)                  # if clamped, it equals the full extent


def positional_encoding_forward(x: jnp.ndarray, pe: jnp.ndarray) -> jnp.ndarray:
    """x: (seq_len, batch_size, embed_dim); pe: (max_len, embed_dim)."""
    seq_len, batch_size, embed_dim = x.shape
    assert batch_size <= pe.shape[0], "batch_size must be <= max_len (pe rows)"
    assert embed_dim == pe.shape[1], "embed_dim mismatch between x and pe"

    row = batch_size * embed_dim
    # Mirrors pe[:, :x.size(1)] from the PyTorch forward (broadcast over seq axis).
    # Cast to x.dtype on the host so the resident pe buffer and the VPU add stay
    # in x's precision and no per-step cast is emitted in the kernel.
    pe_slice = pe[:batch_size, :].astype(x.dtype).reshape(1, row)           # (1, B*D)
    x2d = x.reshape(seq_len, row)                                           # (S, B*D)

    ts = _pick_row_tile(seq_len, row * x.dtype.itemsize)
    grid = (pl.cdiv(seq_len, ts),)

    out2d = pl.pallas_call(
        _pe_add_kernel,
        out_shape=jax.ShapeDtypeStruct((seq_len, row), x.dtype),
        grid=grid,
        in_specs=[
            pl.BlockSpec((ts, row), lambda s: (s, 0)),   # x: many seq rows per step
            pl.BlockSpec((1, row), lambda s: (0, 0)),    # pe: constant -> fetched once
        ],
        out_specs=pl.BlockSpec((ts, row), lambda s: (s, 0)),
        compiler_params=pltpu.CompilerParams(
            dimension_semantics=("parallel",),           # lets v7x shard across 2 TCs
            vmem_limit_bytes=48 * 1024 * 1024,           # double-buffered 4 MiB tiles fit easily
        ),
    )(x2d, pe_slice)

    # TODO(synk): in a real model this add should be fused into the adjacent
    # embedding/attention kernel to avoid the standalone HBM round-trip of x.
    return out2d.reshape(seq_len, batch_size, embed_dim)


if __name__ == "__main__":
    # Small, module-consistent shapes: (seq_len, batch_size, embed_dim)
    seq_len, batch_size, embed_dim, max_len = 8, 4, 32, 16

    key = jax.random.PRNGKey(0)
    x = jax.random.normal(key, (seq_len, batch_size, embed_dim), dtype=jnp.float32)

    pe = build_pe_table(embed_dim=embed_dim, max_len=max_len)

    out = positional_encoding_forward(x, pe)
    out = jax.block_until_ready(out)

    # Reference check against plain-JAX semantics of the PyTorch forward:
    #   x + pe[:, :x.size(1)]  ->  x + pe[None, :batch_size, :]
    ref = x + pe[None, :batch_size, :]
    assert out.shape == x.shape and out.dtype == x.dtype
    assert jnp.allclose(out, ref, atol=1e-6), "mismatch vs reference"

    print("KERNEL_OK")
</pallas_src>

<mosaic_0001>
module attributes {stable_mosaic.version = 11 : i64} {
  func.func @_pe_add_kernel(%arg0: i32, %arg1: memref<8x128xf32, #tpu.memory_space<vmem>>, %arg2: memref<1x128xf32, #tpu.memory_space<vmem>>, %arg3: memref<8x128xf32, #tpu.memory_space<vmem>>) attributes {dimension_semantics = [#tpu.dimension_semantics<parallel>], iteration_bounds = array<i64: 1>, scalar_prefetch = 0 : i64, scratch_operands = 0 : i64, tpu.core_type = #tpu.core_type<tc>, window_params = [{transform_indices = @transform_0, window_bounds = array<i64: 8, 128>}, {pipeline_mode = #tpu.pipeline_mode<synchronous>, transform_indices = @transform_1, window_bounds = array<i64: 1, 128>}, {transform_indices = @transform_2, window_bounds = array<i64: 8, 128>}]} {
    %c0 = arith.constant 0 : index
    %c0_0 = arith.constant 0 : index
    %0 = vector.load %arg1[%c0, %c0_0] : memref<8x128xf32, #tpu.memory_space<vmem>>, vector<8x128xf32>
    %c0_1 = arith.constant 0 : index
    %c0_2 = arith.constant 0 : index
    %1 = vector.load %arg2[%c0_1, %c0_2] : memref<1x128xf32, #tpu.memory_space<vmem>>, vector<1x128xf32>
    %2 = vector.broadcast %1 : vector<1x128xf32> to vector<8x128xf32>
    %3 = arith.addf %0, %2 : vector<8x128xf32>
    %c0_3 = arith.constant 0 : index
    %c0_4 = arith.constant 0 : index
    %4 = vector.load %arg3[%c0_3, %c0_4] : memref<8x128xf32, #tpu.memory_space<vmem>>, vector<8x128xf32>
    tpu.vector_store %arg3[%c0_3, %c0_4], %3 {strides = array<i32>} : memref<8x128xf32, #tpu.memory_space<vmem>>, vector<8x128xf32>,
    return
  }
  func.func @transform_0(%arg0: i32) -> (i32, i32) {
    %c0_i32 = arith.constant 0 : i32
    %c0_i32_0 = arith.constant 0 : i32
    return %arg0, %c0_i32 : i32, i32
  }
  func.func @transform_1(%arg0: i32) -> (i32, i32) {
    %c0_i32 = arith.constant 0 : i32
    %c0_i32_0 = arith.constant 0 : i32
    %c0_i32_1 = arith.constant 0 : i32
    return %c0_i32, %c0_i32_0 : i32, i32
  }
  func.func @transform_2(%arg0: i32) -> (i32, i32) {
    %c0_i32 = arith.constant 0 : i32
    %c0_i32_0 = arith.constant 0 : i32
    return %arg0, %c0_i32 : i32, i32
  }
}

</mosaic_0001>

<llo_original>
// kernel: tpu_custom_call.1
$region0: #{tpu_custom_call.1}
  #allocation0 [shape = 'u32[]', space=smem, size = 0x4, offset = 0x4, fixed_abs, tag = 'smem constant byte address 0x4 - core index']
  #allocation1 [shape = 'u32[72,128]{1,0:T(1,128)}', space=vmem, size = 0x9000, scoped, tag = 'internal scratch']
  %s0 = inlined_call_operand.hbm [shape: f32[8,128], index: 0, kind: input, shape index: {}]
  %s1 = inlined_call_operand.hbm [shape: f32[1,128], index: 1, kind: input, shape index: {}]
  %s2 = inlined_call_operand.hbm [shape: f32[8,128], index: 2, kind: output, shape index: {}]
  %s3 = sld [smem:[#allocation0]]
  $region26: #{tpu_custom_call.1} parent=0
    _
  %s5 = ssub.s32 1, %s3
  %s6 = scalar_select 0, %s5, %s3
  $region1: #{tpu_custom_call.1} parent=0
    #allocation2 [shape = 'u8[4096]{0}', space=vmem, size = 0x1000, scoped, tag = 'input window, operand 0, single buffered']
    #allocation3 [shape = 's32[1]{0}', space=sflag, size = 0x4, scoped, tag = 'scoped memory for tpu_custom_call.1']
    #allocation4 [shape = 's32[1]{0}', space=sflag, size = 0x4, scoped, tag = 'scoped memory for tpu_custom_call.1']
    #allocation5 [shape = 'u8[512]{0}', space=vmem, size = 0x400, scoped, tag = 'input window, operand 1, single buffered']
    #allocation6 [shape = 's32[1]{0}', space=sflag, size = 0x4, scoped, tag = 'scoped memory for tpu_custom_call.1']
    #allocation7 [shape = 'u8[4096]{0}', space=vmem, size = 0x1000, scoped, tag = 'output window, operand 0, single buffered']
    %7 = vsyncpa [#allocation3], 0
    %8 = vsyncpa [#allocation6], 0
    %9 = vsyncpa [#allocation4], 0
    // Predicated region
    $region2: #{tpu_custom_call.1} parent=1 // pred_check
      _
    $region3: #{tpu_custom_call.1} parent=1 // pred_check_branch
      %11 = sbr.rel (0) target = $region5
    $region4: #{tpu_custom_call.1} parent=1 // pred_region
      %13 = vsyncadd [#allocation3], 0
      %s15 = sshll.u32 %s0, 4
      %s16 = int_to_ptr.hbm [resolvable:$true] %s15
      %s17 = sshll.u32 [#allocation2], 4
      %s18 = int_to_ptr.vmem [resolvable:$true] %s17
      %20 = dma.hbm_to_vmem [thread:$0]  %s16, 128, %s18, [#allocation3]
    $region5: #{tpu_custom_call.1} parent=1 // pred_fallthru
      _
    // Predicated region
    $region6: #{tpu_custom_call.1} parent=1 // pred_check
      _
    $region7: #{tpu_custom_call.1} parent=1 // pred_check_branch
      %22 = sbr.rel (0) target = $region9
    $region8: #{tpu_custom_call.1} parent=1 // pred_region
      %24 = vsyncadd [#allocation6], 0
      %s26 = sshll.u32 %s1, 4
      %s27 = int_to_ptr.hbm [resolvable:$true] %s26
      %s28 = sshll.u32 [#allocation5], 4
      %s29 = int_to_ptr.vmem [resolvable:$true] %s28
      %31 = dma.hbm_to_vmem [thread:$0]  %s27, 16, %s29, [#allocation6]
    $region9: #{tpu_custom_call.1} parent=1 // pred_fallthru
      _
    // Predicated region
    $region10: #{tpu_custom_call.1} parent=1 // pred_check
      _
    $region11: #{tpu_custom_call.1} parent=1 // pred_check_branch
      %33 = sbr.rel (0) target = $region13
    $region12: #{tpu_custom_call.1} parent=1 // pred_region
      %35 = dma.done [#allocation3], 128
    $region13: #{tpu_custom_call.1} parent=1 // pred_fallthru
      _
    // Predicated region
    $region14: #{tpu_custom_call.1} parent=1 // pred_check
      _
    $region15: #{tpu_custom_call.1} parent=1 // pred_check_branch
      %37 = sbr.rel (0) target = $region17
    $region16: #{tpu_custom_call.1} parent=1 // pred_region
      %39 = dma.done [#allocation6], 16
    $region17: #{tpu_custom_call.1} parent=1 // pred_fallthru
      _
    %v40 = vld [vmem:[#allocation2] sm:$0xff]
    %v41 = vld [vmem:[#allocation5] sm:$0x1]
    %v43 = vperm.slane %v41, 0
    %v45 = vadd.f32 %v40, %v43
    %46 = vst [vmem:[#allocation7] sm:$0xff] %v45
    // Predicated region
    $region18: #{tpu_custom_call.1} parent=1 // pred_check
      _
    $region19: #{tpu_custom_call.1} parent=1 // pred_check_branch
      %48 = sbr.rel (0) target = $region21
    $region20: #{tpu_custom_call.1} parent=1 // pred_region
      %50 = vsyncadd [#allocation4], 0
      %s52 = sshll.u32 [#allocation7], 4
      %s53 = int_to_ptr.vmem [resolvable:$true] %s52
      %s54 = sshll.u32 %s2, 4
      %s55 = int_to_ptr.hbm [resolvable:$true] %s54
      %57 = dma.vmem_to_hbm [thread:$0]  %s53, 128, %s55, [#allocation4]
    $region21: #{tpu_custom_call.1} parent=1 // pred_fallthru
      _
    // Predicated region
    $region22: #{tpu_custom_call.1} parent=1 // pred_check
      _
    $region23: #{tpu_custom_call.1} parent=1 // pred_check_branch
      %59 = sbr.rel (0) target = $region25
    $region24: #{tpu_custom_call.1} parent=1 // pred_region
      %61 = dma.done [#allocation4], 128
    $region25: #{tpu_custom_call.1} parent=1 // pred_fallthru
      _
    %62 = vsyncpa [#allocation3], 1
    %63 = vsyncpa [#allocation6], 1
    %64 = vsyncpa [#allocation4], 1

</llo_original>
